<compile_context>
chip_gen: v7x
topology: tpu7x:2x2x1
jax: 0.10.0
libtpu: 0.0.40
codegen_flags: <defaults>
</compile_context>

<pallas_src>
import math
import jax
import jax.numpy as jnp
from jax import lax
from jax.experimental import pallas as pl
from jax.experimental.pallas import tpu as pltpu

NEG_SLOPE = 0.2  # LeakyReLU negative slope (module default)


def _round_up(x, m):
    return ((x + m - 1) // m) * m


def _vmem_limit_bytes():
    # Generation-aware scoped-VMEM budget: ~3/4 of physical, capped at 96 MiB
    # (v5e/v6e have 128 MiB physical, v7x has 64 MiB per core).
    cap = 64 * 1024 * 1024
    try:
        cap = int(getattr(pltpu.get_tpu_info(), "vmem_capacity_bytes", cap))
    except Exception:
        pass
    return max(32 * 1024 * 1024, min(cap * 3 // 4, 96 * 1024 * 1024))


# ----------------------------------------------------------------------------
# Kernel 1: edge kernel.  grid = (E tiles [parallel], N tiles [arbitrary])
#   Xe = diag(1/deg_e) @ (cnt @ XW)   -- bf16 x bf16 MXU, f32 accumulation.
# ----------------------------------------------------------------------------
def _edge_kernel(cnt_ref, xw_ref, invdeg_ref, xe_ref, acc_ref):
    k = pl.program_id(1)

    @pl.when(k == 0)
    def _():
        acc_ref[...] = jnp.zeros_like(acc_ref)

    acc_ref[...] += jnp.dot(cnt_ref[...], xw_ref[...],
                            preferred_element_type=jnp.float32)

    @pl.when(k == pl.num_programs(1) - 1)
    def _():
        # mean over incidences, emitted in bf16 (halves writeback / re-read)
        xe_ref[...] = (acc_ref[...] * invdeg_ref[...]).astype(xe_ref.dtype)


# ----------------------------------------------------------------------------
# Kernel 2: node kernel.  grid = (N tiles [parallel], E tiles [arbitrary])
#   [Num | Den] = cnt^T @ [exp(a)*Xe | exp(a)]   (single 256-lane bf16 matmul)
#   epilogue:  out = l2norm(Num * reciprocal(Den))
# ----------------------------------------------------------------------------
def _node_kernel(cntT_ref, z_ref, out_ref, acc_ref):
    k = pl.program_id(1)

    @pl.when(k == 0)
    def _():
        acc_ref[...] = jnp.zeros_like(acc_ref)

    acc_ref[...] += jnp.dot(cntT_ref[...], z_ref[...],
                            preferred_element_type=jnp.float32)

    @pl.when(k == pl.num_programs(1) - 1)
    def _():
        hcp = acc_ref.shape[1] // 2
        agg = acc_ref[...]
        num = agg[:, :hcp]            # lane-aligned 128-wide slices
        den = agg[:, hcp:]
        # deferred softmax division; empty / padded nodes: num = den = 0 -> 0
        xv = num * pl.reciprocal(den + 1e-16, approx=True)
        # row-wise L2 norm (args.use_norm = True); pad channels are exact 0
        sq = jnp.sum(xv * xv, axis=1, keepdims=True)
        scale = jnp.where(sq > 0.0, lax.rsqrt(sq), 0.0)
        out_ref[...] = (xv * scale).astype(out_ref.dtype)


# ----------------------------------------------------------------------------
# Wrapper
# ----------------------------------------------------------------------------
def unigat_forward(X, Wmat, att_e, vertex, edges, N, E, H, C,
                   tile_n=256, tile_e=256):
    f32 = jnp.float32
    Fin = X.shape[1]

    # pad per-head channels so H * C_pad is a multiple of 128 (lane-dense)
    C_pad = C
    while (H * C_pad) % 128 != 0:
        C_pad += 1
    HCp = H * C_pad

    # tile sizes: multiples of 128, clamped so small graphs don't over-pad
    # (pass tile_n=tile_e=128 on v5e; 256 fills the 256-wide MXU on v6e/v7x)
    tile_n = min(tile_n, _round_up(N, 128))
    tile_e = min(tile_e, _round_up(E, 128))
    Np = _round_up(N, tile_n)
    Ep = _round_up(E, tile_e)

    # ---- wrapper prep (small / one-off XLA ops) -----------------------------
    # incidence multiplicity matrix; bf16 is exact for counts <= 256
    cnt = jnp.zeros((Ep, Np), f32).at[edges, vertex].add(1.0)
    deg = jnp.sum(cnt, axis=1, keepdims=True)                       # (Ep, 1)
    inv_deg = jnp.where(deg > 0.0, 1.0 / jnp.maximum(deg, 1.0), 0.0)
    cnt_bf = cnt.astype(jnp.bfloat16)
    cntT_bf = cnt_bf.T                                              # (Np, Ep)

    # XW = X @ W once (bf16 MXU operand for the edge kernel; W dropped there)
    W_pad = jnp.zeros((Fin, H, C_pad), f32).at[:, :, :C].set(
        Wmat.reshape(Fin, H, C)).reshape(Fin, HCp)
    XW = jnp.zeros((Np, HCp), f32).at[:N].set(
        jnp.dot(X.astype(f32), W_pad)).astype(jnp.bfloat16)

    cparams = pltpu.CompilerParams(
        dimension_semantics=("parallel", "arbitrary"),
        vmem_limit_bytes=_vmem_limit_bytes())

    # ---- kernel 1: per-edge mean features Xe --------------------------------
    xe = pl.pallas_call(
        _edge_kernel,
        out_shape=jax.ShapeDtypeStruct((Ep, HCp), jnp.bfloat16),
        grid=(Ep // tile_e, Np // tile_n),
        in_specs=[
            pl.BlockSpec((tile_e, tile_n), lambda i, k: (i, k)),    # cnt tile
            pl.BlockSpec((tile_n, HCp), lambda i, k: (k, 0)),       # XW tile
            pl.BlockSpec((tile_e, 1), lambda i, k: (i, 0)),         # 1/deg
        ],
        out_specs=pl.BlockSpec((tile_e, HCp), lambda i, k: (i, 0)),
        scratch_shapes=[pltpu.VMEM((tile_e, HCp), f32)],
        compiler_params=cparams,
        cost_estimate=pl.CostEstimate(
            flops=int(2 * Ep * Np * HCp),
            transcendentals=0,
            bytes_accessed=int(Ep * Np * 2 + (Ep // tile_e) * Np * HCp * 2
                               + Ep * 4 + Ep * HCp * 2)),
    )(cnt_bf, XW, inv_deg)

    # ---- attention prep: O(E*H) / O(E*HCp) only (tiny) ----------------------
    xe_f = xe.astype(f32).reshape(Ep, H, C_pad)
    logit = jnp.sum(xe_f[:, :, :C] * att_e[None], axis=-1)          # (Ep, H)
    a = jnp.where(logit > 0.0, logit, NEG_SLOPE * logit)            # LeakyReLU
    # exact global per-head shift -- cancels in Num/Den, so the E-blocked
    # accumulation needs no rescaling (per-node underflow only for gaps >~88)
    a = a - jnp.max(a, axis=0, keepdims=True)
    ea = jnp.exp(a)                                                 # (Ep, H)
    num_rhs = (xe_f * ea[:, :, None]).reshape(Ep, HCp)              # exp-weighted Xe
    den_rhs = jnp.broadcast_to(ea[:, :, None], (Ep, H, C_pad)).reshape(Ep, HCp)
    Z = jnp.concatenate([num_rhs, den_rhs], axis=1).astype(jnp.bfloat16)

    # ---- kernel 2: per-node aggregation + softmax divide + L2 norm ----------
    out_full = pl.pallas_call(
        _node_kernel,
        out_shape=jax.ShapeDtypeStruct((Np, HCp), f32),
        grid=(Np // tile_n, Ep // tile_e),
        in_specs=[
            pl.BlockSpec((tile_n, tile_e), lambda i, k: (i, k)),    # cnt^T tile
            pl.BlockSpec((tile_e, 2 * HCp), lambda i, k: (k, 0)),   # [Y | exp(a)]
        ],
        out_specs=pl.BlockSpec((tile_n, HCp), lambda i, k: (i, 0)),
        scratch_shapes=[pltpu.VMEM((tile_n, 2 * HCp), f32)],
        compiler_params=cparams,
        cost_estimate=pl.CostEstimate(
            flops=int(2 * Np * Ep * 2 * HCp),
            transcendentals=int(Np * (HCp + 1)),
            bytes_accessed=int(Np * Ep * 2
                               + (Np // tile_n) * Ep * 2 * HCp * 2
                               + Np * HCp * 4)),
    )(cntT_bf, Z)

    # strip node / per-head channel padding (tiny, plain JAX)
    return out_full[:N].reshape(N, H, C_pad)[:, :, :C].reshape(N, H * C)


# ----------------------------------------------------------------------------
# Pure-JAX reference mirroring the PyTorch forward (segment ops).
# ----------------------------------------------------------------------------
def unigat_reference(X, Wmat, att_e, vertex, edges, N, E, H, C):
    X0 = X @ Wmat                                           # (N, H*C)
    Xh = X0.reshape(N, H, C)
    Xve = Xh[vertex]                                        # (nnz, H, C)
    ones = jnp.ones((vertex.shape[0],), jnp.float32)
    cnt = jax.ops.segment_sum(ones, edges, num_segments=E)
    Xe = jax.ops.segment_sum(Xve, edges, num_segments=E) / jnp.maximum(cnt, 1.0)[:, None, None]
    alpha_e = (Xe * att_e[None]).sum(-1)                    # (E, H)
    a_ev = alpha_e[edges]
    a = jnp.where(a_ev > 0, a_ev, NEG_SLOPE * a_ev)
    amax = jax.ops.segment_max(a, vertex, num_segments=N)
    ea = jnp.exp(a - amax[vertex])
    seg = jax.ops.segment_sum(ea, vertex, num_segments=N)
    alpha = ea / (seg[vertex] + 1e-16)
    Xev = Xe[edges] * alpha[..., None]
    Xv = jax.ops.segment_sum(Xev, vertex, num_segments=N)
    Xflat = Xv.reshape(N, H * C)
    nrm = jnp.linalg.norm(Xflat, axis=1, keepdims=True)
    scale = jnp.where(nrm > 0, 1.0 / nrm, 0.0)
    return Xflat * scale


if __name__ == "__main__":
    # Small deterministic hypergraph (non-multiples exercise the padding path;
    # both kernels run multi-step blocked reductions).
    N, E, nnz = 300, 300, 2048      # nodes, hyperedges, incidence pairs
    F_in, H, C = 96, 8, 8           # in_channels, heads, out_channels

    key = jax.random.PRNGKey(0)
    kx, kw, ka, kv, ke = jax.random.split(key, 5)

    X = jax.random.normal(kx, (N, F_in), jnp.float32)

    # nn.Linear(in, H*C, bias=False): uniform(-1/sqrt(in), 1/sqrt(in))
    bound_w = 1.0 / math.sqrt(F_in)
    Wmat = jax.random.uniform(kw, (F_in, H * C), jnp.float32, -bound_w, bound_w)

    # att_e: glorot uniform over (1, H, C) -> stdv = sqrt(6 / (H + C))
    stdv = math.sqrt(6.0 / (H + C))
    att_e = jax.random.uniform(ka, (H, C), jnp.float32, -stdv, stdv)

    vertex = jax.random.randint(kv, (nnz,), 0, N, jnp.int32)
    edges = jax.random.randint(ke, (nnz,), 0, E, jnp.int32)

    # Feed the bf16-rounded features to both paths so the check isolates the
    # kernel math (the kernels run bf16 MXU inputs with f32 accumulation).
    X_bf = X.astype(jnp.bfloat16)

    out = unigat_forward(X_bf, Wmat, att_e, vertex, edges, N, E, H, C)
    out = jax.block_until_ready(out)

    ref = unigat_reference(X_bf.astype(jnp.float32), Wmat, att_e, vertex, edges,
                           N, E, H, C)
    assert out.shape == (N, H * C)
    err = float(jnp.max(jnp.abs(out - ref)))
    # tolerance covers bf16 operand rounding + approx EUP reciprocal
    assert jnp.allclose(out, ref, rtol=1e-2, atol=2e-3), f"max abs err {err}"

    print("KERNEL_OK")
</pallas_src>

<mosaic_0001>
module attributes {stable_mosaic.version = 11 : i64} {
  func.func @_edge_kernel(%arg0: i32, %arg1: i32, %arg2: memref<256x256xbf16, #tpu.memory_space<vmem>>, %arg3: memref<256x128xbf16, #tpu.memory_space<vmem>>, %arg4: memref<256x1xf32, #tpu.memory_space<vmem>>, %arg5: memref<256x128xbf16, #tpu.memory_space<vmem>>, %arg6: memref<256x128xf32, #tpu.memory_space<vmem>>) attributes {dimension_semantics = [#tpu.dimension_semantics<parallel>, #tpu.dimension_semantics<arbitrary>], iteration_bounds = array<i64: 2, 2>, scalar_prefetch = 0 : i64, scratch_operands = 1 : i64, tpu.core_type = #tpu.core_type<tc>, window_params = [{transform_indices = @transform_0, window_bounds = array<i64: 256, 256>}, {transform_indices = @transform_1, window_bounds = array<i64: 256, 128>}, {transform_indices = @transform_2, window_bounds = array<i64: 256, 1>}, {transform_indices = @transform_3, window_bounds = array<i64: 256, 128>}]} {
    %c0_i32 = arith.constant 0 : i32
    %0 = arith.cmpi eq, %arg1, %c0_i32 : i32
    %1 = arith.extui %0 : i1 to i32
    %c0_i32_0 = arith.constant 0 : i32
    %2 = arith.cmpi ne, %1, %c0_i32_0 : i32
    scf.if %2 {
      %cst_9 = arith.constant 0.000000e+00 : f32
      %12 = vector.broadcast %cst_9 : f32 to vector<256x128xf32>
      %c0_10 = arith.constant 0 : index
      %c0_11 = arith.constant 0 : index
      %13 = vector.load %arg6[%c0_10, %c0_11] : memref<256x128xf32, #tpu.memory_space<vmem>>, vector<256x128xf32>
      tpu.vector_store %arg6[%c0_10, %c0_11], %12 {strides = array<i32>} : memref<256x128xf32, #tpu.memory_space<vmem>>, vector<256x128xf32>,
    } else {
    }
    %c0 = arith.constant 0 : index
    %c0_1 = arith.constant 0 : index
    %3 = vector.load %arg6[%c0, %c0_1] : memref<256x128xf32, #tpu.memory_space<vmem>>, vector<256x128xf32>
    %c0_2 = arith.constant 0 : index
    %c0_3 = arith.constant 0 : index
    %4 = vector.load %arg2[%c0_2, %c0_3] : memref<256x256xbf16, #tpu.memory_space<vmem>>, vector<256x256xbf16>
    %c0_4 = arith.constant 0 : index
    %c0_5 = arith.constant 0 : index
    %5 = vector.load %arg3[%c0_4, %c0_5] : memref<256x128xbf16, #tpu.memory_space<vmem>>, vector<256x128xbf16>
    %cst = arith.constant dense<0.000000e+00> : vector<256x128xf32>
    %6 = tpu.matmul %4, %5, %cst {dimension_numbers = #tpu.dot_dimension_numbers<[1], [0], [0], [1], [0, 0, 1, 1], [], []>} : vector<256x256xbf16>, vector<256x128xbf16>, vector<256x128xf32> -> vector<256x128xf32>
    %7 = arith.addf %3, %6 : vector<256x128xf32>
    %c0_6 = arith.constant 0 : index
    %c0_7 = arith.constant 0 : index
    %8 = vector.load %arg6[%c0_6, %c0_7] : memref<256x128xf32, #tpu.memory_space<vmem>>, vector<256x128xf32>
    tpu.vector_store %arg6[%c0_6, %c0_7], %7 {strides = array<i32>} : memref<256x128xf32, #tpu.memory_space<vmem>>, vector<256x128xf32>,
    %c1_i32 = arith.constant 1 : i32
    %9 = arith.cmpi eq, %arg1, %c1_i32 : i32
    %10 = arith.extui %9 : i1 to i32
    %c0_i32_8 = arith.constant 0 : i32
    %11 = arith.cmpi ne, %10, %c0_i32_8 : i32
    scf.if %11 {
      %c0_9 = arith.constant 0 : index
      %c0_10 = arith.constant 0 : index
      %12 = vector.load %arg6[%c0_9, %c0_10] : memref<256x128xf32, #tpu.memory_space<vmem>>, vector<256x128xf32>
      %c0_11 = arith.constant 0 : index
      %c0_12 = arith.constant 0 : index
      %13 = vector.load %arg4[%c0_11, %c0_12] : memref<256x1xf32, #tpu.memory_space<vmem>>, vector<256x1xf32>
      %14 = vector.broadcast %13 : vector<256x1xf32> to vector<256x128xf32>
      %15 = arith.mulf %12, %14 : vector<256x128xf32>
      %16 = arith.truncf %15 : vector<256x128xf32> to vector<256x128xbf16>
      %c0_13 = arith.constant 0 : index
      %c0_14 = arith.constant 0 : index
      %17 = vector.load %arg5[%c0_13, %c0_14] : memref<256x128xbf16, #tpu.memory_space<vmem>>, vector<256x128xbf16>
      tpu.vector_store %arg5[%c0_13, %c0_14], %16 {strides = array<i32>} : memref<256x128xbf16, #tpu.memory_space<vmem>>, vector<256x128xbf16>,
    } else {
    }
    return
  }
  func.func @transform_0(%arg0: i32, %arg1: i32) -> (i32, i32) {
    %c0_i32 = arith.constant 0 : i32
    return %arg0, %arg1 : i32, i32
  }
  func.func @transform_1(%arg0: i32, %arg1: i32) -> (i32, i32) {
    %c0_i32 = arith.constant 0 : i32
    %c0_i32_0 = arith.constant 0 : i32
    return %arg1, %c0_i32 : i32, i32
  }
  func.func @transform_2(%arg0: i32, %arg1: i32) -> (i32, i32) {
    %c0_i32 = arith.constant 0 : i32
    %c0_i32_0 = arith.constant 0 : i32
    return %arg0, %c0_i32 : i32, i32
  }
  func.func @transform_3(%arg0: i32, %arg1: i32) -> (i32, i32) {
    %c0_i32 = arith.constant 0 : i32
    %c0_i32_0 = arith.constant 0 : i32
    return %arg0, %c0_i32 : i32, i32
  }
}

</mosaic_0001>

<llo_original>
// kernel: tpu_custom_call.1
$region0: #{tpu_custom_call.1}
  #allocation0 [shape = 'u32[]', space=smem, size = 0x4, offset = 0x4, fixed_abs, tag = 'smem constant byte address 0x4 - core index']
  #allocation1 [shape = 'u32[144,128]{1,0:T(1,128)}', space=vmem, size = 0x12000, scoped, tag = 'internal scratch']
  #allocation2 [shape = 'f32[256,128]{1,0:T(8,128)}', space=vmem, size = 0x20000, scoped, tag = 'scratch operand']
  %s0 = inlined_call_operand.hbm [shape: bf16[512,512], index: 0, kind: input, shape index: {}]
  %s1 = inlined_call_operand.vmem [shape: bf16[512,128], index: 1, kind: input, shape index: {}]
  %s2 = inlined_call_operand.vmem [shape: f32[512,1], index: 2, kind: input, shape index: {}]
  %s3 = inlined_call_operand.hbm [shape: bf16[512,128], index: 3, kind: output, shape index: {}]
  %s4 = sld [smem:[#allocation0]]
  $region57: #{tpu_custom_call.1} parent=0
    _
  %s6 = ssub.s32 1, %s4
  %s7 = scalar_select 0, %s6, %s4
  $region1: #{tpu_custom_call.1} parent=0
    #allocation3 [shape = 'u8[262144]{0}', space=vmem, size = 0x40000, scoped, tag = 'input window, operand 0']
    #allocation4 [shape = 's32[2]{0}', space=sflag, size = 0x8, scoped, tag = 'scoped memory for tpu_custom_call.1']
    #allocation5 [shape = 's32[2]{0}', space=sflag, size = 0x8, scoped, tag = 'scoped memory for tpu_custom_call.1']
    #allocation6 [shape = 'u8[131072]{0}', space=vmem, size = 0x20000, scoped, tag = 'output window, operand 0']
    %8 = vsyncpa [#allocation4], 0
    %s9 = scalar_lea.sflag [#allocation4], 1
    %10 = vsyncpa %s9, 0
    %11 = vsyncpa [#allocation5], 0
    %s12 = scalar_lea.sflag [#allocation5], 1
    %13 = vsyncpa %s12, 0
    loop: start=0, step=1, limit=6
    $region2: #{tpu_custom_call.1} parent=1 // loop_pre_header
      _
    $region3: #{tpu_custom_call.1} parent=1 // loop_header
      %s15 = sphi 0, %s19
      %p16 = scmp.ge.s32.totalorder %s15, 6
      %s22 = sphi 0, %s34
      %s23 = sphi 0, %s30
      %s24 = sphi 0, %s22
      %s25 = sphi 0, %s23
      %s26 = sphi 0, %s24
      %s27 = sphi 0, %s25
      %s39 = sphi 0, %s41
      %s42 = sphi 0, %s39
      %s43 = sphi 0, %s42
      %s59 = sphi 0, %s43
      %s65 = sphi 0, %s67
      %s68 = sphi 0, %s65
      %s69 = sphi 0, %s68
      %s85 = sphi 0, %s69
      %s91 = sphi 0, %s93
      %s94 = sphi 0, %s91
      %s95 = sphi 0, %s94
      %s111 = sphi 0, %s95
      %s117 = sphi 0, %s119
      %s120 = sphi 0, %s117
      %s121 = sphi 0, %s120
      %s137 = sphi 0, %s121
    $region4: #{tpu_custom_call.1} parent=1 // loop_header_branch
      %18 = sbr.rel (%p16) target = $region8
    $region5: #{tpu_custom_call.1} parent=1 // loop_body
      %s20 = ssub.s32 %s15, 1
      %s21 = ssub.s32 %s15, 2
      %s28 = sadd.s32 1, %s23
      %p29 = scmp.ge.s32.totalorder %s28, 2
      %s30 = scalar_select %p29, 0, %s28
      %s31 = sadd.s32 1, %s22
      %s32 = scalar_select %p29, %s31, %s22
      %p33 = scmp.ge.s32.totalorder %s32, 2
      %s34 = scalar_select %p33, 0, %s32
      %s35 = ssub.s32 %s22, %s34
      %s36 = ssub.s32 %s23, %s30
      %s37 = sor.u32 %s35, %s36
      %p38 = scmp.eq.s32.totalorder %s37, 0
      %s40 = sadd.s32 %s39, 1
      %s41 = scalar_select %p38, %s39, %s40
      %p44 = pneg %p38
      %p45 = scmp.eq.s32.totalorder %s15, 3
      %p46 = por %p44, %p45
      %p47 = scmp.ne.s32.totalorder %s39, %s42
      %p48 = scmp.eq.s32.totalorder %s15, 0
      %p49 = por %p47, %p48
      %p50 = scmp.ne.s32.totalorder %s39, %s42
      %p51 = scmp.eq.s32.totalorder %s20, 3
      %p52 = por %p50, %p51
      %p53 = scmp.ne.s32.totalorder %s42, %s43
      %p54 = scmp.eq.s32.totalorder %s20, 0
      %p55 = por %p53, %p54
      %p56 = scmp.ne.s32.totalorder %s42, %s43
      %p57 = scmp.eq.s32.totalorder %s21, 3
      %p58 = por %p56, %p57
      %p60 = scmp.ne.s32.totalorder %s43, %s59
      %p61 = scmp.eq.s32.totalorder %s21, 0
      %p62 = por %p60, %p61
      %s63 = ssub.s32 %s23, %s30
      %p64 = scmp.eq.s32.totalorder %s63, 0
      %s66 = sadd.s32 %s65, 1
      %s67 = scalar_select %p64, %s65, %s66
      %p70 = pneg %p64
      %p71 = scmp.eq.s32.totalorder %s15, 3
      %p72 = por %p70, %p71
      %p73 = scmp.ne.s32.totalorder %s65, %s68
      %p74 = scmp.eq.s32.totalorder %s15, 0
      %p75 = por %p73, %p74
      %p76 = scmp.ne.s32.totalorder %s65, %s68
      %p77 = scmp.eq.s32.totalorder %s20, 3
      %p78 = por %p76, %p77
      %p79 = scmp.ne.s32.totalorder %s68, %s69
      %p80 = scmp.eq.s32.totalorder %s20, 0
      %p81 = por %p79, %p80
      %p82 = scmp.ne.s32.totalorder %s68, %s69
      %p83 = scmp.eq.s32.totalorder %s21, 3
      %p84 = por %p82, %p83
      %p86 = scmp.ne.s32.totalorder %s69, %s85
      %p87 = scmp.eq.s32.totalorder %s21, 0
      %p88 = por %p86, %p87
      %s89 = ssub.s32 %s22, %s34
      %p90 = scmp.eq.s32.totalorder %s89, 0
      %s92 = sadd.s32 %s91, 1
      %s93 = scalar_select %p90, %s91, %s92
      %p96 = pneg %p90
      %p97 = scmp.eq.s32.totalorder %s15, 3
      %p98 = por %p96, %p97
      %p99 = scmp.ne.s32.totalorder %s91, %s94
      %p100 = scmp.eq.s32.totalorder %s15, 0
      %p101 = por %p99, %p100
      %p102 = scmp.ne.s32.totalorder %s91, %s94
      %p103 = scmp.eq.s32.totalorder %s20, 3
      %p104 = por %p102, %p103
      %p105 = scmp.ne.s32.totalorder %s94, %s95
      %p106 = scmp.eq.s32.totalorder %s20, 0
      %p107 = por %p105, %p106
      %p108 = scmp.ne.s32.totalorder %s94, %s95
      %p109 = scmp.eq.s32.totalorder %s21, 3
      %p110 = por %p108, %p109
      %p112 = scmp.ne.s32.totalorder %s95, %s111
      %p113 = scmp.eq.s32.totalorder %s21, 0
      %p114 = por %p112, %p113
      %s115 = ssub.s32 %s22, %s34
      %p116 = scmp.eq.s32.totalorder %s115, 0
      %s118 = sadd.s32 %s117, 1
      %s119 = scalar_select %p116, %s117, %s118
      %p122 = pneg %p116
      %p123 = scmp.eq.s32.totalorder %s15, 3
      %p124 = por %p122, %p123
      %p125 = scmp.ne.s32.totalorder %s117, %s120
      %p126 = scmp.eq.s32.totalorder %s15, 0
      %p127 = por %p125, %p126
      %p128 = scmp.ne.s32.totalorder %s117, %s120
      %p129 = scmp.eq.s32.totalorder %s20, 3
      %p130 = por %p128, %p129
      %p131 = scmp.ne.s32.totalorder %s120, %s121
      %p132 = scmp.eq.s32.totalorder %s20, 0
      %p133 = por %p131, %p132
      %p134 = scmp.ne.s32.totalorder %s120, %s121
      %p135 = scmp.eq.s32.totalorder %s21, 3
      %p136 = por %p134, %p135
      %p138 = scmp.ne.s32.totalorder %s121, %s137
      %p139 = scmp.eq.s32.totalorder %s21, 0
      %p140 = por %p138, %p139
      %p141 = scmp.le.s32.totalorder 1, %s15
      %p142 = scmp.lt.s32.totalorder %s15, 5
      %p143 = pnand %p141, %p142
      %p144 = pneg %p143
      // Predicated region
      $region9: #{tpu_custom_call.1} parent=5 // pred_check
        _
      $region10: #{tpu_custom_call.1} parent=5 // pred_check_branch
        %146 = sbr.rel (%p143) target = $region12
      $region11: #{tpu_custom_call.1} parent=5 // pred_region
        %s147 = ssub.s32 %s15, 1
      $region12: #{tpu_custom_call.1} parent=5 // pred_fallthru
        _
      %p148 = scmp.lt.s32.totalorder %s15, 4
      // Predicated region
      $region13: #{tpu_custom_call.1} parent=5 // pred_check
        %p149 = pneg %p148
      $region14: #{tpu_custom_call.1} parent=5 // pred_check_branch
        %151 = sbr.rel (%p149) target = $region16
      $region15: #{tpu_custom_call.1} parent=5 // pred_region
        // Predicated region
        $region17: #{tpu_custom_call.1} parent=15 // pred_check
          %p152 = pneg %p49
        $region18: #{tpu_custom_call.1} parent=15 // pred_check_branch
          %154 = sbr.rel (%p152) target = $region20
        $region19: #{tpu_custom_call.1} parent=15 // pred_region
          %s155 = sand.u32 %s39, 1
          %s156 = scalar_lea.sflag [#allocation4], %s155
          %s157 = sand.u32 %s39, 1
          %s158 = smul.addr %s157, 256
          %s159 = scalar_lea.vmem [#allocation3], %s158
          %s160 = smul.u32 32, %s22
          %s161 = smul.u32 2, %s23
          %s163 = ssub.s32 4096, 4096
          %164 = vsyncadd %s156, %s163
          %s165 = smul.addr %s160, 4
          %s166 = sadd.s32 %s161, %s165
          %s167 = smul.addr %s166, 64
          %s168 = scalar_lea.hbm %s0, %s167
          %s169 = sshll.u32 %s159, 4
          %s170 = int_to_ptr.vmem [resolvable:$true] %s169
          %175 = dma.hbm_to_vmem [thread:$0]  %s168, 4096, %s170, %s156, 256, 128, 8
        $region20: #{tpu_custom_call.1} parent=15 // pred_fallthru
          _
        // Predicated region
        $region21: #{tpu_custom_call.1} parent=15 // pred_check
          %p176 = pneg %p75
        $region22: #{tpu_custom_call.1} parent=15 // pred_check_branch
          %178 = sbr.rel (%p176) target = $region24
        $region23: #{tpu_custom_call.1} parent=15 // pred_region
          %s179 = smul.u32 32, %s23
          %p180 = scmp.lt.s32.totalorder %s179, 63
          %s181 = scalar_select %p180, %s179, 63
          %s182 = smul.addr %s181, 4
          %s183 = scalar_lea.vmem %s1, %s182
          %s184 = smul.u32 32, %s23
        $region24: #{tpu_custom_call.1} parent=15 // pred_fallthru
          _
        // Predicated region
        $region25: #{tpu_custom_call.1} parent=15 // pred_check
          %p185 = pneg %p101
        $region26: #{tpu_custom_call.1} parent=15 // pred_check_branch
          %187 = sbr.rel (%p185) target = $region28
        $region27: #{tpu_custom_call.1} parent=15 // pred_region
          %s188 = smul.u32 32, %s22
          %p189 = scmp.lt.s32.totalorder %s188, 63
          %s190 = scalar_select %p189, %s188, 63
          %s191 = smul.addr %s190, 8
          %s192 = scalar_lea.vmem %s2, %s191
          %s193 = smul.u32 32, %s22
        $region28: #{tpu_custom_call.1} parent=15 // pred_fallthru
          _
      $region16: #{tpu_custom_call.1} parent=5 // pred_fallthru
        _
      %p194 = scmp.le.s32.totalorder 1, %s15
      %p195 = scmp.lt.s32.totalorder %s15, 5
      %p196 = pnand %p194, %p195
      %p197 = pneg %p196
      // Predicated region
      $region29: #{tpu_custom_call.1} parent=5 // pred_check
        _
      $region30: #{tpu_custom_call.1} parent=5 // pred_check_branch
        %199 = sbr.rel (%p196) target = $region32
      $region31: #{tpu_custom_call.1} parent=5 // pred_region
        %s200 = ssub.s32 %s15, 1
        %s201 = sand.u32 %s42, 1
        %s202 = scalar_lea.sflag [#allocation4], %s201
        %s203 = sand.u32 %s42, 1
        %s204 = smul.addr %s203, 256
        %s205 = scalar_lea.vmem [#allocation3], %s204
        // Predicated region
        $region33: #{tpu_custom_call.1} parent=31 // pred_check
          %p206 = pneg %p55
        $region34: #{tpu_custom_call.1} parent=31 // pred_check_branch
          %208 = sbr.rel (%p206) target = $region36
        $region35: #{tpu_custom_call.1} parent=31 // pred_region
          %209 = dma.done %s202, 4096
        $region36: #{tpu_custom_call.1} parent=31 // pred_fallthru
          _
        %s210 = sand.u32 %s42, 1
        %s211 = scalar_lea.sflag [#allocation4], %s210
        %s212 = sand.u32 %s42, 1
        %s213 = smul.addr %s212, 256
        %s214 = scalar_lea.vmem [#allocation3], %s213
        %p215 = pneg %p55
        %p216 = pneg %p52
        %s217 = smul.u32 32, %s25
        %p218 = scmp.lt.s32.totalorder %s217, 63
        %s219 = scalar_select %p218, %s217, 63
        %s220 = smul.addr %s219, 4
        %s221 = scalar_lea.vmem %s1, %s220
        %p222 = pneg %p81
        %p223 = pneg %p78
        %s224 = smul.u32 32, %s24
        %p225 = scmp.lt.s32.totalorder %s224, 63
        %s226 = scalar_select %p225, %s224, 63
        %s227 = smul.addr %s226, 8
        %s228 = scalar_lea.vmem %s2, %s227
        %p229 = pneg %p107
        %p230 = pneg %p104
        %p231 = pneg %p133
        %p232 = pneg %p130
        %s233 = sand.u32 %s120, 1
        %s234 = scalar_lea.sflag [#allocation5], %s233
        %s235 = sand.u32 %s120, 1
        %s236 = smul.addr %s235, 128
        %s237 = scalar_lea.vmem [#allocation6], %s236
        %s238 = smul.u32 32, %s24
        %s239 = smul.u32 2, %s25
        %s240 = smul.u32 32, %s25
        %p241 = scmp.lt.s32.totalorder %s240, 63
        %s242 = scalar_select %p241, %s240, 63
        %s243 = smul.addr %s242, 4
        %s244 = scalar_lea.vmem %s1, %s243
        %s245 = smul.u32 32, %s25
        %s246 = smul.u32 32, %s24
        %p247 = scmp.lt.s32.totalorder %s246, 63
        %s248 = scalar_select %p247, %s246, 63
        %s249 = smul.addr %s248, 8
        %s250 = scalar_lea.vmem %s2, %s249
        %s251 = smul.u32 32, %s24
        %s252 = smul.u32 32, %s24
        %p254 = scmp.eq.s32.totalorder %s25, 0
        // Predicated region
        $region37: #{tpu_custom_call.1} parent=31 // pred_check
          %p255 = pneg %p254
        $region38: #{tpu_custom_call.1} parent=31 // pred_check_branch
          %257 = sbr.rel (%p255) target = $region40
        $region39: #{tpu_custom_call.1} parent=31 // pred_region
          %258 = vst [vmem:[#allocation2] sm:$0xff] 0.0
          %259 = vst [vmem:[#allocation2 + $0x8] sm:$0xff] 0.0
          %260 = vst [vmem:[#allocation2 + $0x10] sm:$0xff] 0.0
          %261 = vst [vmem:[#allocation2 + $0x18] sm:$0xff] 0.0
          %262 = vst [vmem:[#allocation2 + $0x20] sm:$0xff] 0.0
          %263 = vst [vmem:[#allocation2 + $0x28] sm:$0xff] 0.0
          %264 = vst [vmem:[#allocation2 + $0x30] sm:$0xff] 0.0
          %265 = vst [vmem:[#allocation2 + $0x38] sm:$0xff] 0.0
          %266 = vst [vmem:[#allocation2 + $0x40] sm:$0xff] 0.0
          %267 = vst [vmem:[#allocation2 + $0x48] sm:$0xff] 0.0
          %268 = vst [vmem:[#allocation2 + $0x50] sm:$0xff] 0.0
          %269 = vst [vmem:[#allocation2 + $0x58] sm:$0xff] 0.0
          %270 = vst [vmem:[#allocation2 + $0x60] sm:$0xff] 0.0
          %271 = vst [vmem:[#allocation2 + $0x68] sm:$0xff] 0.0
          %272 = vst [vmem:[#allocation2 + $0x70] sm:$0xff] 0.0
          %273 = vst [vmem:[#allocation2 + $0x78] sm:$0xff] 0.0
          %274 = vst [vmem:[#allocation2 + $0x80] sm:$0xff] 0.0
          %275 = vst [vmem:[#allocation2 + $0x88] sm:$0xff] 0.0
          %276 = vst [vmem:[#allocation2 + $0x90] sm:$0xff] 0.0
          %277 = vst [vmem:[#allocation2 + $0x98] sm:$0xff] 0.0
          %278 = vst [vmem:[#allocation2 + $0xa0] sm:$0xff] 0.0
          %279 = vst [vmem:[#allocation2 + $0xa8] sm:$0xff] 0.0
          %280 = vst [vmem:[#allocation2 + $0xb0] sm:$0xff] 0.0
          %281 = vst [vmem:[#allocation2 + $0xb8] sm:$0xff] 0.0
          %282 = vst [vmem:[#allocation2 + $0xc0] sm:$0xff] 0.0
          %283 = vst [vmem:[#allocation2 + $0xc8] sm:$0xff] 0.0
          %284 = vst [vmem:[#allocation2 + $0xd0] sm:$0xff] 0.0
          %285 = vst [vmem:[#allocation2 + $0xd8] sm:$0xff] 0.0
          %286 = vst [vmem:[#allocation2 + $0xe0] sm:$0xff] 0.0
          %287 = vst [vmem:[#allocation2 + $0xe8] sm:$0xff] 0.0
          %288 = vst [vmem:[#allocation2 + $0xf0] sm:$0xff] 0.0
          %289 = vst [vmem:[#allocation2 + $0xf8] sm:$0xff] 0.0
        $region40: #{tpu_custom_call.1} parent=31 // pred_fallthru
          _
        %v290 = vld [vmem:[#allocation2] sm:$0xff]
        %v291 = vld [vmem:[#allocation2 + $0x8] sm:$0xff]
        %v292 = vld [vmem:[#allocation2 + $0x10] sm:$0xff]
        %v293 = vld [vmem:[#allocation2 + $0x18] sm:$0xff]
        %v294 = vld [vmem:[#allocation2 + $0x20] sm:$0xff]
        %v295 = vld [vmem:[#allocation2 + $0x28] sm:$0xff]
        %v296 = vld [vmem:[#allocation2 + $0x30] sm:$0xff]
        %v297 = vld [vmem:[#allocation2 + $0x38] sm:$0xff]
        %v298 = vld [vmem:[#allocation2 + $0x40] sm:$0xff]
        %v299 = vld [vmem:[#allocation2 + $0x48] sm:$0xff]
        %v300 = vld [vmem:[#allocation2 + $0x50] sm:$0xff]
        %v301 = vld [vmem:[#allocation2 + $0x58] sm:$0xff]
        %v302 = vld [vmem:[#allocation2 + $0x60] sm:$0xff]
        %v303 = vld [vmem:[#allocation2 + $0x68] sm:$0xff]
        %v304 = vld [vmem:[#allocation2 + $0x70] sm:$0xff]
        %v305 = vld [vmem:[#allocation2 + $0x78] sm:$0xff]
        %v306 = vld [vmem:[#allocation2 + $0x80] sm:$0xff]
        %v307 = vld [vmem:[#allocation2 + $0x88] sm:$0xff]
        %v308 = vld [vmem:[#allocation2 + $0x90] sm:$0xff]
        %v309 = vld [vmem:[#allocation2 + $0x98] sm:$0xff]
        %v310 = vld [vmem:[#allocation2 + $0xa0] sm:$0xff]
        %v311 = vld [vmem:[#allocation2 + $0xa8] sm:$0xff]
        %v312 = vld [vmem:[#allocation2 + $0xb0] sm:$0xff]
        %v313 = vld [vmem:[#allocation2 + $0xb8] sm:$0xff]
        %v314 = vld [vmem:[#allocation2 + $0xc0] sm:$0xff]
        %v315 = vld [vmem:[#allocation2 + $0xc8] sm:$0xff]
        %v316 = vld [vmem:[#allocation2 + $0xd0] sm:$0xff]
        %v317 = vld [vmem:[#allocation2 + $0xd8] sm:$0xff]
        %v318 = vld [vmem:[#allocation2 + $0xe0] sm:$0xff]
        %v319 = vld [vmem:[#allocation2 + $0xe8] sm:$0xff]
        %v320 = vld [vmem:[#allocation2 + $0xf0] sm:$0xff]
        %v321 = vld [vmem:[#allocation2 + $0xf8] sm:$0xff]
        %v322 = vld [vmem:[%s205] sm:$0xff]
        %v323 = vld [vmem:[%s205 + $0x8] sm:$0xff]
        %v324 = vld [vmem:[%s205 + $0x10] sm:$0xff]
        %v325 = vld [vmem:[%s205 + $0x18] sm:$0xff]
        %v326 = vld [vmem:[%s205 + $0x20] sm:$0xff]
        %v327 = vld [vmem:[%s205 + $0x28] sm:$0xff]
        %v328 = vld [vmem:[%s205 + $0x30] sm:$0xff]
        %v329 = vld [vmem:[%s205 + $0x38] sm:$0xff]
        %v330 = vld [vmem:[%s205 + $0x40] sm:$0xff]
        %v331 = vld [vmem:[%s205 + $0x48] sm:$0xff]
        %v332 = vld [vmem:[%s205 + $0x50] sm:$0xff]
        %v333 = vld [vmem:[%s205 + $0x58] sm:$0xff]
        %v334 = vld [vmem:[%s205 + $0x60] sm:$0xff]
        %v335 = vld [vmem:[%s205 + $0x68] sm:$0xff]
        %v336 = vld [vmem:[%s205 + $0x70] sm:$0xff]
        %v337 = vld [vmem:[%s205 + $0x78] sm:$0xff]
        %v338 = vld [vmem:[%s205 + $0x80] sm:$0xff]
        %v339 = vld [vmem:[%s205 + $0x88] sm:$0xff]
        %v340 = vld [vmem:[%s205 + $0x90] sm:$0xff]
        %v341 = vld [vmem:[%s205 + $0x98] sm:$0xff]
        %v342 = vld [vmem:[%s205 + $0xa0] sm:$0xff]
        %v343 = vld [vmem:[%s205 + $0xa8] sm:$0xff]
        %v344 = vld [vmem:[%s205 + $0xb0] sm:$0xff]
        %v345 = vld [vmem:[%s205 + $0xb8] sm:$0xff]
        %v346 = vld [vmem:[%s205 + $0xc0] sm:$0xff]
        %v347 = vld [vmem:[%s205 + $0xc8] sm:$0xff]
        %v348 = vld [vmem:[%s205 + $0xd0] sm:$0xff]
        %v349 = vld [vmem:[%s205 + $0xd8] sm:$0xff]
        %v350 = vld [vmem:[%s205 + $0xe0] sm:$0xff]
        %v351 = vld [vmem:[%s205 + $0xe8] sm:$0xff]
        %v352 = vld [vmem:[%s205 + $0xf0] sm:$0xff]
        %v353 = vld [vmem:[%s205 + $0xf8] sm:$0xff]
        %v354 = vld [vmem:[%s244] sm:$0xf]
        %v355 = vld [vmem:[%s244 + $0x4] sm:$0xf]
        %v356 = vld [vmem:[%s244 + $0x8] sm:$0xf]
        %v357 = vld [vmem:[%s244 + $0xc] sm:$0xf]
        %v358 = vld [vmem:[%s244 + $0x10] sm:$0xf]
        %v359 = vld [vmem:[%s244 + $0x14] sm:$0xf]
        %v360 = vld [vmem:[%s244 + $0x18] sm:$0xf]
        %v361 = vld [vmem:[%s244 + $0x1c] sm:$0xf]
        %v362 = vld [vmem:[%s244 + $0x20] sm:$0xf]
        %v363 = vld [vmem:[%s244 + $0x24] sm:$0xf]
        %v364 = vld [vmem:[%s244 + $0x28] sm:$0xf]
        %v365 = vld [vmem:[%s244 + $0x2c] sm:$0xf]
        %v366 = vld [vmem:[%s244 + $0x30] sm:$0xf]
        %v367 = vld [vmem:[%s244 + $0x34] sm:$0xf]
        %v368 = vld [vmem:[%s244 + $0x38] sm:$0xf]
        %v369 = vld [vmem:[%s244 + $0x3c] sm:$0xf]
        %v370 = vld [vmem:[%s244 + $0x40] sm:$0xf]
        %v371 = vld [vmem:[%s244 + $0x44] sm:$0xf]
        %v372 = vld [vmem:[%s244 + $0x48] sm:$0xf]
        %v373 = vld [vmem:[%s244 + $0x4c] sm:$0xf]
        %v374 = vld [vmem:[%s244 + $0x50] sm:$0xf]
        %v375 = vld [vmem:[%s244 + $0x54] sm:$0xf]
        %v376 = vld [vmem:[%s244 + $0x58] sm:$0xf]
        %v377 = vld [vmem:[%s244 + $0x5c] sm:$0xf]
        %v378 = vld [vmem:[%s244 + $0x60] sm:$0xf]
        %v379 = vld [vmem:[%s244 + $0x64] sm:$0xf]
        %v380 = vld [vmem:[%s244 + $0x68] sm:$0xf]
        %v381 = vld [vmem:[%s244 + $0x6c] sm:$0xf]
        %v382 = vld [vmem:[%s244 + $0x70] sm:$0xf]
        %v383 = vld [vmem:[%s244 + $0x74] sm:$0xf]
        %v384 = vld [vmem:[%s244 + $0x78] sm:$0xf]
        %v385 = vld [vmem:[%s244 + $0x7c] sm:$0xf]
        %v418 = vunpack.c.l.b16 %v322
        %v419 = vunpack.c.h.b16 %v322
        %v420 = vunpack.c.l.b16 %v323
        %v421 = vunpack.c.h.b16 %v323
        %v422 = vunpack.c.l.b16 %v324
        %v423 = vunpack.c.h.b16 %v324
        %v424 = vunpack.c.l.b16 %v325
        %v425 = vunpack.c.h.b16 %v325
        %v426 = vunpack.c.l.b16 %v326
        %v427 = vunpack.c.h.b16 %v326
        %v428 = vunpack.c.l.b16 %v327
        %v429 = vunpack.c.h.b16 %v327
        %v430 = vunpack.c.l.b16 %v328
        %v431 = vunpack.c.h.b16 %v328
        %v432 = vunpack.c.l.b16 %v329
        %v433 = vunpack.c.h.b16 %v329
        %v434 = vunpack.c.l.b16 %v330
        %v435 = vunpack.c.h.b16 %v330
        %v436 = vunpack.c.l.b16 %v331
        %v437 = vunpack.c.h.b16 %v331
        %v438 = vunpack.c.l.b16 %v332
        %v439 = vunpack.c.h.b16 %v332
        %v440 = vunpack.c.l.b16 %v333
        %v441 = vunpack.c.h.b16 %v333
        %v442 = vunpack.c.l.b16 %v334
        %v443 = vunpack.c.h.b16 %v334
        %v444 = vunpack.c.l.b16 %v335
        %v445 = vunpack.c.h.b16 %v335
        %v446 = vunpack.c.l.b16 %v336
        %v447 = vunpack.c.h.b16 %v336
        %v448 = vunpack.c.l.b16 %v337
        %v449 = vunpack.c.h.b16 %v337
        %v450 = vunpack.c.l.b16 %v338
        %v451 = vunpack.c.h.b16 %v338
        %v452 = vunpack.c.l.b16 %v339
        %v453 = vunpack.c.h.b16 %v339
        %v454 = vunpack.c.l.b16 %v340
        %v455 = vunpack.c.h.b16 %v340
        %v456 = vunpack.c.l.b16 %v341
        %v457 = vunpack.c.h.b16 %v341
        %v458 = vunpack.c.l.b16 %v342
        %v459 = vunpack.c.h.b16 %v342
        %v460 = vunpack.c.l.b16 %v343
        %v461 = vunpack.c.h.b16 %v343
        %v462 = vunpack.c.l.b16 %v344
        %v463 = vunpack.c.h.b16 %v344
        %v464 = vunpack.c.l.b16 %v345
        %v465 = vunpack.c.h.b16 %v345
        %v466 = vunpack.c.l.b16 %v346
        %v467 = vunpack.c.h.b16 %v346
        %v468 = vunpack.c.l.b16 %v347
        %v469 = vunpack.c.h.b16 %v347
        %v470 = vunpack.c.l.b16 %v348
        %v471 = vunpack.c.h.b16 %v348
        %v472 = vunpack.c.l.b16 %v349
        %v473 = vunpack.c.h.b16 %v349
        %v474 = vunpack.c.l.b16 %v350
        %v475 = vunpack.c.h.b16 %v350
        %v476 = vunpack.c.l.b16 %v351
        %v477 = vunpack.c.h.b16 %v351
        %v478 = vunpack.c.l.b16 %v352
        %v479 = vunpack.c.h.b16 %v352
        %v480 = vunpack.c.l.b16 %v353
        %v481 = vunpack.c.h.b16 %v353
        %v482 = vpack.c.b16 %v420, %v418
        %v483 = vpack.c.b16 %v421, %v419
        %v484 = vpack.c.b16 %v424, %v422
        %v485 = vpack.c.b16 %v425, %v423
        %v486 = vpack.c.b16 %v428, %v426
        %v487 = vpack.c.b16 %v429, %v427
        %v488 = vpack.c.b16 %v432, %v430
        %v489 = vpack.c.b16 %v433, %v431
        %v490 = vpack.c.b16 %v436, %v434
        %v491 = vpack.c.b16 %v437, %v435
        %v492 = vpack.c.b16 %v440, %v438
        %v493 = vpack.c.b16 %v441, %v439
        %v494 = vpack.c.b16 %v444, %v442
        %v495 = vpack.c.b16 %v445, %v443
        %v496 = vpack.c.b16 %v448, %v446
        %v497 = vpack.c.b16 %v449, %v447
        %v498 = vpack.c.b16 %v452, %v450
        %v499 = vpack.c.b16 %v453, %v451
        %v500 = vpack.c.b16 %v456, %v454
        %v501 = vpack.c.b16 %v457, %v455
        %v502 = vpack.c.b16 %v460, %v458
        %v503 = vpack.c.b16 %v461, %v459
        %v504 = vpack.c.b16 %v464, %v462
        %v505 = vpack.c.b16 %v465, %v463
        %v506 = vpack.c.b16 %v468, %v466
        %v507 = vpack.c.b16 %v469, %v467
        %v508 = vpack.c.b16 %v472, %v470
        %v509 = vpack.c.b16 %v473, %v471
        %v510 = vpack.c.b16 %v476, %v474
        %v511 = vpack.c.b16 %v477, %v475
        %v512 = vpack.c.b16 %v480, %v478
        %v513 = vpack.c.b16 %v481, %v479
        %v578 = vunpack.c.l.b16 %v354
        %v579 = vunpack.c.l.b16 %v355
        %v580 = vunpack.c.l.b16 %v356
        %v581 = vunpack.c.l.b16 %v357
        %v582 = vunpack.c.l.b16 %v358
        %v583 = vunpack.c.l.b16 %v359
        %v584 = vunpack.c.l.b16 %v360
        %v585 = vunpack.c.l.b16 %v361
        %v586 = vunpack.c.l.b16 %v362
        %v587 = vunpack.c.l.b16 %v363
        %v588 = vunpack.c.l.b16 %v364
        %v589 = vunpack.c.l.b16 %v365
        %v590 = vunpack.c.l.b16 %v366
        %v591 = vunpack.c.l.b16 %v367
        %v592 = vunpack.c.l.b16 %v368
        %v593 = vunpack.c.l.b16 %v369
        %v594 = vunpack.c.l.b16 %v370
        %v595 = vunpack.c.l.b16 %v371
        %v596 = vunpack.c.l.b16 %v372
        %v597 = vunpack.c.l.b16 %v373
        %v598 = vunpack.c.l.b16 %v374
        %v599 = vunpack.c.l.b16 %v375
        %v600 = vunpack.c.l.b16 %v376
        %v601 = vunpack.c.l.b16 %v377
        %v602 = vunpack.c.l.b16 %v378
        %v603 = vunpack.c.l.b16 %v379
        %v604 = vunpack.c.l.b16 %v380
        %v605 = vunpack.c.l.b16 %v381
        %v606 = vunpack.c.l.b16 %v382
        %v607 = vunpack.c.l.b16 %v383
        %v608 = vunpack.c.l.b16 %v384
        %v609 = vunpack.c.l.b16 %v385
        %v610 = vpack.c.b16 %v579, %v578
        %v611 = vpack.c.b16 %v581, %v580
        %v612 = vpack.c.b16 %v583, %v582
        %v613 = vpack.c.b16 %v585, %v584
        %v614 = vpack.c.b16 %v587, %v586
        %v615 = vpack.c.b16 %v589, %v588
        %v616 = vpack.c.b16 %v591, %v590
        %v617 = vpack.c.b16 %v593, %v592
        %v618 = vpack.c.b16 %v595, %v594
        %v619 = vpack.c.b16 %v597, %v596
        %v620 = vpack.c.b16 %v599, %v598
        %v621 = vpack.c.b16 %v601, %v600
        %v622 = vpack.c.b16 %v603, %v602
        %v623 = vpack.c.b16 %v605, %v604
        %v624 = vpack.c.b16 %v607, %v606
        %v625 = vpack.c.b16 %v609, %v608
        %642 = vmatprep.subr.bf16.mxu0 0
        %643 = vmatpush1.bf16.msra.mxu0 %v610
        %644 = vmatprep.subr.bf16.mxu0 0
        %645 = vmatpush1.bf16.msra.mxu0 %v611
        %646 = vmatprep.subr.bf16.mxu0 0
        %647 = vmatpush1.bf16.msra.mxu0 %v612
        %648 = vmatprep.subr.bf16.mxu0 0
        %649 = vmatpush1.bf16.msra.mxu0 %v613
        %650 = vmatprep.subr.bf16.mxu0 0
        %651 = vmatpush1.bf16.msra.mxu0 %v614
        %652 = vmatprep.subr.bf16.mxu0 0
        %653 = vmatpush1.bf16.msra.mxu0 %v615
        %654 = vmatprep.subr.bf16.mxu0 0
        %655 = vmatpush1.bf16.msra.mxu0 %v616
        %656 = vmatprep.subr.bf16.mxu0 0
        %657 = vmatpush1.bf16.msra.mxu0 %v617
        %658 = vmatprep.subr.bf16.mxu0 0
        %659 = vmatpush1.bf16.msra.mxu0 %v618
        %660 = vmatprep.subr.bf16.mxu0 0
        %661 = vmatpush1.bf16.msra.mxu0 %v619
        %662 = vmatprep.subr.bf16.mxu0 0
        %663 = vmatpush1.bf16.msra.mxu0 %v620
        %664 = vmatprep.subr.bf16.mxu0 0
        %665 = vmatpush1.bf16.msra.mxu0 %v621
        %666 = vmatprep.subr.bf16.mxu0 0
        %667 = vmatpush1.bf16.msra.mxu0 %v622
        %668 = vmatprep.subr.bf16.mxu0 0
        %669 = vmatpush1.bf16.msra.mxu0 %v623
        %670 = vmatprep.subr.bf16.mxu0 0
        %671 = vmatpush1.bf16.msra.mxu0 %v624
        %672 = vmatprep.subr.bf16.mxu0 0
        %673 = vmatpush1.bf16.msra.mxu0 %v625
        %674 = vmatprep.mubr.bf16.mxu0 %v483
        %675 = vmatmul.mubr.bf16.gmra.mrb[0].mxu0 %v482
        %v676 = vpop.f32.mrb[0].mxu0
        %v677 = vadd.f32 0.0, %v676
        %v678 = vpop.f32.mrb[0].mxu0
        %v679 = vpop.f32.mrb[0].mxu0
        %v680 = vadd.f32 0.0, %v679
        %v681 = vpop.f32.mrb[0].mxu0
        %682 = vmatprep.mubr.bf16.mxu0 %v485
        %683 = vmatmul.mubr.bf16.gmra.mrb[0].mxu0 %v484
        %v684 = vpop.f32.mrb[0].mxu0
        %v685 = vadd.f32 0.0, %v684
        %v686 = vpop.f32.mrb[0].mxu0
        %v687 = vpop.f32.mrb[0].mxu0
        %v688 = vadd.f32 0.0, %v687
        %v689 = vpop.f32.mrb[0].mxu0
        %690 = vmatprep.mubr.bf16.mxu0 %v487
        %691 = vmatmul.mubr.bf16.gmra.mrb[0].mxu0 %v486
        %v692 = vpop.f32.mrb[0].mxu0
        %v693 = vadd.f32 0.0, %v692
        %v694 = vpop.f32.mrb[0].mxu0
        %v695 = vpop.f32.mrb[0].mxu0
        %v696 = vadd.f32 0.0, %v695
        %v697 = vpop.f32.mrb[0].mxu0
        %698 = vmatprep.mubr.bf16.mxu0 %v489
        %699 = vmatmul.mubr.bf16.gmra.mrb[0].mxu0 %v488
        %v700 = vpop.f32.mrb[0].mxu0
        %v701 = vadd.f32 0.0, %v700
        %v702 = vpop.f32.mrb[0].mxu0
        %v703 = vpop.f32.mrb[0].mxu0
        %v704 = vadd.f32 0.0, %v703
        %v705 = vpop.f32.mrb[0].mxu0
        %706 = vmatprep.mubr.bf16.mxu0 %v491
        %707 = vmatmul.mubr.bf16.gmra.mrb[0].mxu0 %v490
        %v708 = vpop.f32.mrb[0].mxu0
        %v709 = vadd.f32 0.0, %v708
        %v710 = vpop.f32.mrb[0].mxu0
        %v711 = vpop.f32.mrb[0].mxu0
        %v712 = vadd.f32 0.0, %v711
        %v713 = vpop.f32.mrb[0].mxu0
        %714 = vmatprep.mubr.bf16.mxu0 %v493
        %715 = vmatmul.mubr.bf16.gmra.mrb[0].mxu0 %v492
        %v716 = vpop.f32.mrb[0].mxu0
        %v717 = vadd.f32 0.0, %v716
        %v718 = vpop.f32.mrb[0].mxu0
        %v719 = vpop.f32.mrb[0].mxu0
        %v720 = vadd.f32 0.0, %v719
        %v721 = vpop.f32.mrb[0].mxu0
        %722 = vmatprep.mubr.bf16.mxu0 %v495
        %723 = vmatmul.mubr.bf16.gmra.mrb[0].mxu0 %v494
        %v724 = vpop.f32.mrb[0].mxu0
        %v725 = vadd.f32 0.0, %v724
        %v726 = vpop.f32.mrb[0].mxu0
        %v727 = vpop.f32.mrb[0].mxu0
        %v728 = vadd.f32 0.0, %v727
        %v729 = vpop.f32.mrb[0].mxu0
        %730 = vmatprep.mubr.bf16.mxu0 %v497
        %731 = vmatmul.mubr.bf16.gmra.mrb[0].mxu0 %v496
        %v732 = vpop.f32.mrb[0].mxu0
        %v733 = vadd.f32 0.0, %v732
        %v734 = vpop.f32.mrb[0].mxu0
        %v735 = vpop.f32.mrb[0].mxu0
        %v736 = vadd.f32 0.0, %v735
        %v737 = vpop.f32.mrb[0].mxu0
        %738 = vmatprep.mubr.bf16.mxu0 %v499
        %739 = vmatmul.mubr.bf16.gmra.mrb[0].mxu0 %v498
        %v740 = vpop.f32.mrb[0].mxu0
        %v741 = vadd.f32 0.0, %v740
        %v742 = vpop.f32.mrb[0].mxu0
        %v743 = vpop.f32.mrb[0].mxu0
        %v744 = vadd.f32 0.0, %v743
        %v745 = vpop.f32.mrb[0].mxu0
        %746 = vmatprep.mubr.bf16.mxu0 %v501
        %747 = vmatmul.mubr.bf16.gmra.mrb[0].mxu0 %v500
        %v748 = vpop.f32.mrb[0].mxu0
        %v749 = vadd.f32 0.0, %v748
        %v750 = vpop.f32.mrb[0].mxu0
        %v751 = vpop.f32.mrb[0].mxu0
        %v752 = vadd.f32 0.0, %v751
        %v753 = vpop.f32.mrb[0].mxu0
        %754 = vmatprep.mubr.bf16.mxu0 %v503
        %755 = vmatmul.mubr.bf16.gmra.mrb[0].mxu0 %v502
        %v756 = vpop.f32.mrb[0].mxu0
        %v757 = vadd.f32 0.0, %v756
        %v758 = vpop.f32.mrb[0].mxu0
        %v759 = vpop.f32.mrb[0].mxu0
        %v760 = vadd.f32 0.0, %v759
        %v761 = vpop.f32.mrb[0].mxu0
        %762 = vmatprep.mubr.bf16.mxu0 %v505
        %763 = vmatmul.mubr.bf16.gmra.mrb[0].mxu0 %v504
        %v764 = vpop.f32.mrb[0].mxu0
        %v765 = vadd.f32 0.0, %v764
        %v766 = vpop.f32.mrb[0].mxu0
        %v767 = vpop.f32.mrb[0].mxu0
        %v768 = vadd.f32 0.0, %v767
        %v769 = vpop.f32.mrb[0].mxu0
        %770 = vmatprep.mubr.bf16.mxu0 %v507
        %771 = vmatmul.mubr.bf16.gmra.mrb[0].mxu0 %v506
        %v772 = vpop.f32.mrb[0].mxu0
        %v773 = vadd.f32 0.0, %v772
        %v774 = vpop.f32.mrb[0].mxu0
        %v775 = vpop.f32.mrb[0].mxu0
        %v776 = vadd.f32 0.0, %v775
        %v777 = vpop.f32.mrb[0].mxu0
        %778 = vmatprep.mubr.bf16.mxu0 %v509
        %779 = vmatmul.mubr.bf16.gmra.mrb[0].mxu0 %v508
        %v780 = vpop.f32.mrb[0].mxu0
        %v781 = vadd.f32 0.0, %v780
        %v782 = vpop.f32.mrb[0].mxu0
        %v783 = vpop.f32.mrb[0].mxu0
        %v784 = vadd.f32 0.0, %v783
        %v785 = vpop.f32.mrb[0].mxu0
        %786 = vmatprep.mubr.bf16.mxu0 %v511
        %787 = vmatmul.mubr.bf16.gmra.mrb[0].mxu0 %v510
        %v788 = vpop.f32.mrb[0].mxu0
        %v789 = vadd.f32 0.0, %v788
        %v790 = vpop.f32.mrb[0].mxu0
        %v791 = vpop.f32.mrb[0].mxu0
        %v792 = vadd.f32 0.0, %v791
        %v793 = vpop.f32.mrb[0].mxu0
        %794 = vmatprep.mubr.bf16.mxu0 %v513
        %795 = vmatmul.mubr.bf16.gmra.mrb[0].mxu0 %v512
        %v796 = vpop.f32.mrb[0].mxu0
        %v797 = vadd.f32 0.0, %v796
        %v798 = vpop.f32.mrb[0].mxu0
        %v799 = vpop.f32.mrb[0].mxu0
        %v800 = vadd.f32 0.0, %v799
        %v801 = vpop.f32.mrb[0].mxu0
        %802 = vdwg.mxu0
        %v803 = vadd.f32 %v290, %v677
        %v804 = vadd.f32 %v291, %v680
        %v805 = vadd.f32 %v292, %v685
        %v806 = vadd.f32 %v293, %v688
        %v807 = vadd.f32 %v294, %v693
        %v808 = vadd.f32 %v295, %v696
        %v809 = vadd.f32 %v296, %v701
        %v810 = vadd.f32 %v297, %v704
        %v811 = vadd.f32 %v298, %v709
        %v812 = vadd.f32 %v299, %v712
        %v813 = vadd.f32 %v300, %v717
        %v814 = vadd.f32 %v301, %v720
        %v815 = vadd.f32 %v302, %v725
        %v816 = vadd.f32 %v303, %v728
        %v817 = vadd.f32 %v304, %v733
        %v818 = vadd.f32 %v305, %v736
        %v819 = vadd.f32 %v306, %v741
        %v820 = vadd.f32 %v307, %v744
        %v821 = vadd.f32 %v308, %v749
        %v822 = vadd.f32 %v309, %v752
        %v823 = vadd.f32 %v310, %v757
        %v824 = vadd.f32 %v311, %v760
        %v825 = vadd.f32 %v312, %v765
        %v826 = vadd.f32 %v313, %v768
        %v827 = vadd.f32 %v314, %v773
        %v828 = vadd.f32 %v315, %v776
        %v829 = vadd.f32 %v316, %v781
        %v830 = vadd.f32 %v317, %v784
        %v831 = vadd.f32 %v318, %v789
        %v832 = vadd.f32 %v319, %v792
        %v833 = vadd.f32 %v320, %v797
        %v834 = vadd.f32 %v321, %v800
        %835 = vst [vmem:[#allocation2] sm:$0xff] %v803
        %836 = vst [vmem:[#allocation2 + $0x8] sm:$0xff] %v804
        %837 = vst [vmem:[#allocation2 + $0x10] sm:$0xff] %v805
        %838 = vst [vmem:[#allocation2 + $0x18] sm:$0xff] %v806
        %839 = vst [vmem:[#allocation2 + $0x20] sm:$0xff] %v807
        %840 = vst [vmem:[#allocation2 + $0x28] sm:$0xff] %v808
        %841 = vst [vmem:[#allocation2 + $0x30] sm:$0xff] %v809
        %842 = vst [vmem:[#allocation2 + $0x38] sm:$0xff] %v810
        %843 = vst [vmem:[#allocation2 + $0x40] sm:$0xff] %v811
        %844 = vst [vmem:[#allocation2 + $0x48] sm:$0xff] %v812
        %845 = vst [vmem:[#allocation2 + $0x50] sm:$0xff] %v813
        %846 = vst [vmem:[#allocation2 + $0x58] sm:$0xff] %v814
        %847 = vst [vmem:[#allocation2 + $0x60] sm:$0xff] %v815
        %848 = vst [vmem:[#allocation2 + $0x68] sm:$0xff] %v816
        %849 = vst [vmem:[#allocation2 + $0x70] sm:$0xff] %v817
        %850 = vst [vmem:[#allocation2 + $0x78] sm:$0xff] %v818
        %851 = vst [vmem:[#allocation2 + $0x80] sm:$0xff] %v819
        %852 = vst [vmem:[#allocation2 + $0x88] sm:$0xff] %v820
        %853 = vst [vmem:[#allocation2 + $0x90] sm:$0xff] %v821
        %854 = vst [vmem:[#allocation2 + $0x98] sm:$0xff] %v822
        %855 = vst [vmem:[#allocation2 + $0xa0] sm:$0xff] %v823
        %856 = vst [vmem:[#allocation2 + $0xa8] sm:$0xff] %v824
        %857 = vst [vmem:[#allocation2 + $0xb0] sm:$0xff] %v825
        %858 = vst [vmem:[#allocation2 + $0xb8] sm:$0xff] %v826
        %859 = vst [vmem:[#allocation2 + $0xc0] sm:$0xff] %v827
        %860 = vst [vmem:[#allocation2 + $0xc8] sm:$0xff] %v828
        %861 = vst [vmem:[#allocation2 + $0xd0] sm:$0xff] %v829
        %862 = vst [vmem:[#allocation2 + $0xd8] sm:$0xff] %v830
        %863 = vst [vmem:[#allocation2 + $0xe0] sm:$0xff] %v831
        %864 = vst [vmem:[#allocation2 + $0xe8] sm:$0xff] %v832
        %865 = vst [vmem:[#allocation2 + $0xf0] sm:$0xff] %v833
        %866 = vst [vmem:[#allocation2 + $0xf8] sm:$0xff] %v834
        %p867 = scmp.eq.s32.totalorder %s25, 1
        // Predicated region
        $region41: #{tpu_custom_call.1} parent=31 // pred_check
          %p868 = pneg %p867
        $region42: #{tpu_custom_call.1} parent=31 // pred_check_branch
          %870 = sbr.rel (%p868) target = $region44
        $region43: #{tpu_custom_call.1} parent=31 // pred_region
          %v871 = vld [vmem:[#allocation2] sm:$0xff]
          %v872 = vld [vmem:[#allocation2 + $0x8] sm:$0xff]
          %v873 = vld [vmem:[#allocation2 + $0x10] sm:$0xff]
          %v874 = vld [vmem:[#allocation2 + $0x18] sm:$0xff]
          %v875 = vld [vmem:[#allocation2 + $0x20] sm:$0xff]
          %v876 = vld [vmem:[#allocation2 + $0x28] sm:$0xff]
          %v877 = vld [vmem:[#allocation2 + $0x30] sm:$0xff]
          %v878 = vld [vmem:[#allocation2 + $0x38] sm:$0xff]
          %v879 = vld [vmem:[#allocation2 + $0x40] sm:$0xff]
          %v880 = vld [vmem:[#allocation2 + $0x48] sm:$0xff]
          %v881 = vld [vmem:[#allocation2 + $0x50] sm:$0xff]
          %v882 = vld [vmem:[#allocation2 + $0x58] sm:$0xff]
          %v883 = vld [vmem:[#allocation2 + $0x60] sm:$0xff]
          %v884 = vld [vmem:[#allocation2 + $0x68] sm:$0xff]
          %v885 = vld [vmem:[#allocation2 + $0x70] sm:$0xff]
          %v886 = vld [vmem:[#allocation2 + $0x78] sm:$0xff]
          %v887 = vld [vmem:[#allocation2 + $0x80] sm:$0xff]
          %v888 = vld [vmem:[#allocation2 + $0x88] sm:$0xff]
          %v889 = vld [vmem:[#allocation2 + $0x90] sm:$0xff]
          %v890 = vld [vmem:[#allocation2 + $0x98] sm:$0xff]
          %v891 = vld [vmem:[#allocation2 + $0xa0] sm:$0xff]
          %v892 = vld [vmem:[#allocation2 + $0xa8] sm:$0xff]
          %v893 = vld [vmem:[#allocation2 + $0xb0] sm:$0xff]
          %v894 = vld [vmem:[#allocation2 + $0xb8] sm:$0xff]
          %v895 = vld [vmem:[#allocation2 + $0xc0] sm:$0xff]
          %v896 = vld [vmem:[#allocation2 + $0xc8] sm:$0xff]
          %v897 = vld [vmem:[#allocation2 + $0xd0] sm:$0xff]
          %v898 = vld [vmem:[#allocation2 + $0xd8] sm:$0xff]
          %v899 = vld [vmem:[#allocation2 + $0xe0] sm:$0xff]
          %v900 = vld [vmem:[#allocation2 + $0xe8] sm:$0xff]
          %v901 = vld [vmem:[#allocation2 + $0xf0] sm:$0xff]
          %v902 = vld [vmem:[#allocation2 + $0xf8] sm:$0xff]
          %v903 = vld [vmem:[%s250] sm:$0xff]
          %v904 = vld [vmem:[%s250 + $0x8] sm:$0xff]
          %v905 = vld [vmem:[%s250 + $0x10] sm:$0xff]
          %v906 = vld [vmem:[%s250 + $0x18] sm:$0xff]
          %v907 = vld [vmem:[%s250 + $0x20] sm:$0xff]
          %v908 = vld [vmem:[%s250 + $0x28] sm:$0xff]
          %v909 = vld [vmem:[%s250 + $0x30] sm:$0xff]
          %v910 = vld [vmem:[%s250 + $0x38] sm:$0xff]
          %v911 = vld [vmem:[%s250 + $0x40] sm:$0xff]
          %v912 = vld [vmem:[%s250 + $0x48] sm:$0xff]
          %v913 = vld [vmem:[%s250 + $0x50] sm:$0xff]
          %v914 = vld [vmem:[%s250 + $0x58] sm:$0xff]
          %v915 = vld [vmem:[%s250 + $0x60] sm:$0xff]
          %v916 = vld [vmem:[%s250 + $0x68] sm:$0xff]
          %v917 = vld [vmem:[%s250 + $0x70] sm:$0xff]
          %v918 = vld [vmem:[%s250 + $0x78] sm:$0xff]
          %v919 = vld [vmem:[%s250 + $0x80] sm:$0xff]
          %v920 = vld [vmem:[%s250 + $0x88] sm:$0xff]
          %v921 = vld [vmem:[%s250 + $0x90] sm:$0xff]
          %v922 = vld [vmem:[%s250 + $0x98] sm:$0xff]
          %v923 = vld [vmem:[%s250 + $0xa0] sm:$0xff]
          %v924 = vld [vmem:[%s250 + $0xa8] sm:$0xff]
          %v925 = vld [vmem:[%s250 + $0xb0] sm:$0xff]
          %v926 = vld [vmem:[%s250 + $0xb8] sm:$0xff]
          %v927 = vld [vmem:[%s250 + $0xc0] sm:$0xff]
          %v928 = vld [vmem:[%s250 + $0xc8] sm:$0xff]
          %v929 = vld [vmem:[%s250 + $0xd0] sm:$0xff]
          %v930 = vld [vmem:[%s250 + $0xd8] sm:$0xff]
          %v931 = vld [vmem:[%s250 + $0xe0] sm:$0xff]
          %v932 = vld [vmem:[%s250 + $0xe8] sm:$0xff]
          %v933 = vld [vmem:[%s250 + $0xf0] sm:$0xff]
          %v934 = vld [vmem:[%s250 + $0xf8] sm:$0xff]
          %936 = vset.pattern.permute.xlu0 0
          %937 = vperm.xlu0 %936, %v903
          %v938 = vpop.permute.xlu0 %937
          %941 = vset.pattern.permute.xlu0 0
          %942 = vperm.xlu0 %941, %v904
          %v943 = vpop.permute.xlu0 %942
          %946 = vset.pattern.permute.xlu0 0
          %947 = vperm.xlu0 %946, %v905
          %v948 = vpop.permute.xlu0 %947
          %951 = vset.pattern.permute.xlu0 0
          %952 = vperm.xlu0 %951, %v906
          %v953 = vpop.permute.xlu0 %952
          %956 = vset.pattern.permute.xlu0 0
          %957 = vperm.xlu0 %956, %v907
          %v958 = vpop.permute.xlu0 %957
          %961 = vset.pattern.permute.xlu0 0
          %962 = vperm.xlu0 %961, %v908
          %v963 = vpop.permute.xlu0 %962
          %966 = vset.pattern.permute.xlu0 0
          %967 = vperm.xlu0 %966, %v909
          %v968 = vpop.permute.xlu0 %967
          %971 = vset.pattern.permute.xlu0 0
          %972 = vperm.xlu0 %971, %v910
          %v973 = vpop.permute.xlu0 %972
          %976 = vset.pattern.permute.xlu0 0
          %977 = vperm.xlu0 %976, %v911
          %v978 = vpop.permute.xlu0 %977
          %981 = vset.pattern.permute.xlu0 0
          %982 = vperm.xlu0 %981, %v912
          %v983 = vpop.permute.xlu0 %982
          %986 = vset.pattern.permute.xlu0 0
          %987 = vperm.xlu0 %986, %v913
          %v988 = vpop.permute.xlu0 %987
          %991 = vset.pattern.permute.xlu0 0
          %992 = vperm.xlu0 %991, %v914
          %v993 = vpop.permute.xlu0 %992
          %996 = vset.pattern.permute.xlu0 0
          %997 = vperm.xlu0 %996, %v915
          %v998 = vpop.permute.xlu0 %997
          %1001 = vset.pattern.permute.xlu0 0
          %1002 = vperm.xlu0 %1001, %v916
          %v1003 = vpop.permute.xlu0 %1002
          %1006 = vset.pattern.permute.xlu0 0
          %1007 = vperm.xlu0 %1006, %v917
          %v1008 = vpop.permute.xlu0 %1007
          %1011 = vset.pattern.permute.xlu0 0
          %1012 = vperm.xlu0 %1011, %v918
          %v1013 = vpop.permute.xlu0 %1012
          %1016 = vset.pattern.permute.xlu0 0
          %1017 = vperm.xlu0 %1016, %v919
          %v1018 = vpop.permute.xlu0 %1017
          %1021 = vset.pattern.permute.xlu0 0
          %1022 = vperm.xlu0 %1021, %v920
          %v1023 = vpop.permute.xlu0 %1022
          %1026 = vset.pattern.permute.xlu0 0
          %1027 = vperm.xlu0 %1026, %v921
          %v1028 = vpop.permute.xlu0 %1027
          %1031 = vset.pattern.permute.xlu0 0
          %1032 = vperm.xlu0 %1031, %v922
          %v1033 = vpop.permute.xlu0 %1032
          %1036 = vset.pattern.permute.xlu0 0
          %1037 = vperm.xlu0 %1036, %v923
          %v1038 = vpop.permute.xlu0 %1037
          %1041 = vset.pattern.permute.xlu0 0
          %1042 = vperm.xlu0 %1041, %v924
          %v1043 = vpop.permute.xlu0 %1042
          %1046 = vset.pattern.permute.xlu0 0
          %1047 = vperm.xlu0 %1046, %v925
          %v1048 = vpop.permute.xlu0 %1047
          %1051 = vset.pattern.permute.xlu0 0
          %1052 = vperm.xlu0 %1051, %v926
          %v1053 = vpop.permute.xlu0 %1052
          %1056 = vset.pattern.permute.xlu0 0
          %1057 = vperm.xlu0 %1056, %v927
          %v1058 = vpop.permute.xlu0 %1057
          %1061 = vset.pattern.permute.xlu0 0
          %1062 = vperm.xlu0 %1061, %v928
          %v1063 = vpop.permute.xlu0 %1062
          %1066 = vset.pattern.permute.xlu0 0
          %1067 = vperm.xlu0 %1066, %v929
          %v1068 = vpop.permute.xlu0 %1067
          %1071 = vset.pattern.permute.xlu0 0
          %1072 = vperm.xlu0 %1071, %v930
          %v1073 = vpop.permute.xlu0 %1072
          %1076 = vset.pattern.permute.xlu0 0
          %1077 = vperm.xlu0 %1076, %v931
          %v1078 = vpop.permute.xlu0 %1077
          %1081 = vset.pattern.permute.xlu0 0
          %1082 = vperm.xlu0 %1081, %v932
          %v1083 = vpop.permute.xlu0 %1082
          %1086 = vset.pattern.permute.xlu0 0
          %1087 = vperm.xlu0 %1086, %v933
          %v1088 = vpop.permute.xlu0 %1087
          %1091 = vset.pattern.permute.xlu0 0
          %1092 = vperm.xlu0 %1091, %v934
          %v1093 = vpop.permute.xlu0 %1092
          %v1095 = vmul.f32 %v871, %v938
          %v1096 = vmul.f32 %v872, %v943
          %v1097 = vmul.f32 %v873, %v948
          %v1098 = vmul.f32 %v874, %v953
          %v1099 = vmul.f32 %v875, %v958
          %v1100 = vmul.f32 %v876, %v963
          %v1101 = vmul.f32 %v877, %v968
          %v1102 = vmul.f32 %v878, %v973
          %v1103 = vmul.f32 %v879, %v978
          %v1104 = vmul.f32 %v880, %v983
          %v1105 = vmul.f32 %v881, %v988
          %v1106 = vmul.f32 %v882, %v993
          %v1107 = vmul.f32 %v883, %v998
          %v1108 = vmul.f32 %v884, %v1003
          %v1109 = vmul.f32 %v885, %v1008
          %v1110 = vmul.f32 %v886, %v1013
          %v1111 = vmul.f32 %v887, %v1018
          %v1112 = vmul.f32 %v888, %v1023
          %v1113 = vmul.f32 %v889, %v1028
          %v1114 = vmul.f32 %v890, %v1033
          %v1115 = vmul.f32 %v891, %v1038
          %v1116 = vmul.f32 %v892, %v1043
          %v1117 = vmul.f32 %v893, %v1048
          %v1118 = vmul.f32 %v894, %v1053
          %v1119 = vmul.f32 %v895, %v1058
          %v1120 = vmul.f32 %v896, %v1063
          %v1121 = vmul.f32 %v897, %v1068
          %v1122 = vmul.f32 %v898, %v1073
          %v1123 = vmul.f32 %v899, %v1078
          %v1124 = vmul.f32 %v900, %v1083
          %v1125 = vmul.f32 %v901, %v1088
          %v1126 = vmul.f32 %v902, %v1093
          %v1127 = vpack.c.bf16 %v1096, %v1095
          %v1128 = vpack.c.bf16 %v1098, %v1097
          %v1129 = vpack.c.bf16 %v1100, %v1099
          %v1130 = vpack.c.bf16 %v1102, %v1101
          %v1131 = vpack.c.bf16 %v1104, %v1103
          %v1132 = vpack.c.bf16 %v1106, %v1105
          %v1133 = vpack.c.bf16 %v1108, %v1107
          %v1134 = vpack.c.bf16 %v1110, %v1109
          %v1135 = vpack.c.bf16 %v1112, %v1111
          %v1136 = vpack.c.bf16 %v1114, %v1113
          %v1137 = vpack.c.bf16 %v1116, %v1115
          %v1138 = vpack.c.bf16 %v1118, %v1117
          %v1139 = vpack.c.bf16 %v1120, %v1119
          %v1140 = vpack.c.bf16 %v1122, %v1121
          %v1141 = vpack.c.bf16 %v1124, %v1123
          %v1142 = vpack.c.bf16 %v1126, %v1125
          %v1159 = vunpack.c.l.b16 %v1127
          %v1160 = vunpack.c.h.b16 %v1127
          %v1161 = vunpack.c.l.b16 %v1128
          %v1162 = vunpack.c.h.b16 %v1128
          %v1163 = vunpack.c.l.b16 %v1129
          %v1164 = vunpack.c.h.b16 %v1129
          %v1165 = vunpack.c.l.b16 %v1130
          %v1166 = vunpack.c.h.b16 %v1130
          %v1167 = vunpack.c.l.b16 %v1131
          %v1168 = vunpack.c.h.b16 %v1131
          %v1169 = vunpack.c.l.b16 %v1132
          %v1170 = vunpack.c.h.b16 %v1132
          %v1171 = vunpack.c.l.b16 %v1133
          %v1172 = vunpack.c.h.b16 %v1133
          %v1173 = vunpack.c.l.b16 %v1134
          %v1174 = vunpack.c.h.b16 %v1134
          %v1175 = vunpack.c.l.b16 %v1135
          %v1176 = vunpack.c.h.b16 %v1135
          %v1177 = vunpack.c.l.b16 %v1136
          %v1178 = vunpack.c.h.b16 %v1136
          %v1179 = vunpack.c.l.b16 %v1137
          %v1180 = vunpack.c.h.b16 %v1137
          %v1181 = vunpack.c.l.b16 %v1138
          %v1182 = vunpack.c.h.b16 %v1138
          %v1183 = vunpack.c.l.b16 %v1139
          %v1184 = vunpack.c.h.b16 %v1139
          %v1185 = vunpack.c.l.b16 %v1140
          %v1186 = vunpack.c.h.b16 %v1140
          %v1187 = vunpack.c.l.b16 %v1141
          %v1188 = vunpack.c.h.b16 %v1141
          %v1189 = vunpack.c.l.b16 %v1142
          %v1190 = vunpack.c.h.b16 %v1142
          %v1191 = vpack.c.b16 %v1159, %v1159
          %v1192 = vpack.c.b16 %v1160, %v1160
          %v1193 = vpack.c.b16 %v1161, %v1161
          %v1194 = vpack.c.b16 %v1162, %v1162
          %v1195 = vpack.c.b16 %v1163, %v1163
          %v1196 = vpack.c.b16 %v1164, %v1164
          %v1197 = vpack.c.b16 %v1165, %v1165
          %v1198 = vpack.c.b16 %v1166, %v1166
          %v1199 = vpack.c.b16 %v1167, %v1167
          %v1200 = vpack.c.b16 %v1168, %v1168
          %v1201 = vpack.c.b16 %v1169, %v1169
          %v1202 = vpack.c.b16 %v1170, %v1170
          %v1203 = vpack.c.b16 %v1171, %v1171
          %v1204 = vpack.c.b16 %v1172, %v1172
          %v1205 = vpack.c.b16 %v1173, %v1173
          %v1206 = vpack.c.b16 %v1174, %v1174
          %v1207 = vpack.c.b16 %v1175, %v1175
          %v1208 = vpack.c.b16 %v1176, %v1176
          %v1209 = vpack.c.b16 %v1177, %v1177
          %v1210 = vpack.c.b16 %v1178, %v1178
          %v1211 = vpack.c.b16 %v1179, %v1179
          %v1212 = vpack.c.b16 %v1180, %v1180
          %v1213 = vpack.c.b16 %v1181, %v1181
          %v1214 = vpack.c.b16 %v1182, %v1182
          %v1215 = vpack.c.b16 %v1183, %v1183
          %v1216 = vpack.c.b16 %v1184, %v1184
          %v1217 = vpack.c.b16 %v1185, %v1185
          %v1218 = vpack.c.b16 %v1186, %v1186
          %v1219 = vpack.c.b16 %v1187, %v1187
          %v1220 = vpack.c.b16 %v1188, %v1188
          %v1221 = vpack.c.b16 %v1189, %v1189
          %v1222 = vpack.c.b16 %v1190, %v1190
          %1255 = vst [vmem:[%s237] sm:$0xf] %v1191
          %1256 = vst [vmem:[%s237 + $0x4] sm:$0xf] %v1192
          %1257 = vst [vmem:[%s237 + $0x8] sm:$0xf] %v1193
          %1258 = vst [vmem:[%s237 + $0xc] sm:$0xf] %v1194
          %1259 = vst [vmem:[%s237 + $0x10] sm:$0xf] %v1195
          %1260 = vst [vmem:[%s237 + $0x14] sm:$0xf] %v1196
          %1261 = vst [vmem:[%s237 + $0x18] sm:$0xf] %v1197
          %1262 = vst [vmem:[%s237 + $0x1c] sm:$0xf] %v1198
          %1263 = vst [vmem:[%s237 + $0x20] sm:$0xf] %v1199
          %1264 = vst [vmem:[%s237 + $0x24] sm:$0xf] %v1200
          %1265 = vst [vmem:[%s237 + $0x28] sm:$0xf] %v1201
          %1266 = vst [vmem:[%s237 + $0x2c] sm:$0xf] %v1202
          %1267 = vst [vmem:[%s237 + $0x30] sm:$0xf] %v1203
          %1268 = vst [vmem:[%s237 + $0x34] sm:$0xf] %v1204
          %1269 = vst [vmem:[%s237 + $0x38] sm:$0xf] %v1205
          %1270 = vst [vmem:[%s237 + $0x3c] sm:$0xf] %v1206
          %1271 = vst [vmem:[%s237 + $0x40] sm:$0xf] %v1207
          %1272 = vst [vmem:[%s237 + $0x44] sm:$0xf] %v1208
          %1273 = vst [vmem:[%s237 + $0x48] sm:$0xf] %v1209
          %1274 = vst [vmem:[%s237 + $0x4c] sm:$0xf] %v1210
          %1275 = vst [vmem:[%s237 + $0x50] sm:$0xf] %v1211
          %1276 = vst [vmem:[%s237 + $0x54] sm:$0xf] %v1212
          %1277 = vst [vmem:[%s237 + $0x58] sm:$0xf] %v1213
          %1278 = vst [vmem:[%s237 + $0x5c] sm:$0xf] %v1214
          %1279 = vst [vmem:[%s237 + $0x60] sm:$0xf] %v1215
          %1280 = vst [vmem:[%s237 + $0x64] sm:$0xf] %v1216
          %1281 = vst [vmem:[%s237 + $0x68] sm:$0xf] %v1217
          %1282 = vst [vmem:[%s237 + $0x6c] sm:$0xf] %v1218
          %1283 = vst [vmem:[%s237 + $0x70] sm:$0xf] %v1219
          %1284 = vst [vmem:[%s237 + $0x74] sm:$0xf] %v1220
          %1285 = vst [vmem:[%s237 + $0x78] sm:$0xf] %v1221
          %1286 = vst [vmem:[%s237 + $0x7c] sm:$0xf] %v1222
        $region44: #{tpu_custom_call.1} parent=31 // pred_fallthru
          _
        %s1287 = sand.u32 %s120, 1
        %s1288 = scalar_lea.sflag [#allocation5], %s1287
        %s1289 = sand.u32 %s120, 1
        %s1290 = smul.addr %s1289, 128
        %s1291 = scalar_lea.vmem [#allocation6], %s1290
        // Predicated region
        $region45: #{tpu_custom_call.1} parent=31 // pred_check
          %p1292 = pneg %p130
        $region46: #{tpu_custom_call.1} parent=31 // pred_check_branch
          %1294 = sbr.rel (%p1292) target = $region48
        $region47: #{tpu_custom_call.1} parent=31 // pred_region
          %s1295 = smul.u32 32, %s24
          %s1297 = ssub.s32 2048, 2048
          %1298 = vsyncadd %s1288, %s1297
          %s1299 = smul.addr %s1295, 64
          %s1300 = scalar_lea.hbm %s3, %s1299
          %s1301 = sshll.u32 %s1291, 4
          %s1302 = int_to_ptr.vmem [resolvable:$true] %s1301
          %1307 = dma.vmem_to_hbm [thread:$0]  %s1302, 2048, %s1300, %s1288, 64, 64, 4
        $region48: #{tpu_custom_call.1} parent=31 // pred_fallthru
          _
      $region32: #{tpu_custom_call.1} parent=5 // pred_fallthru
        _
      %p1308 = scmp.le.s32.totalorder 2, %s15
      // Predicated region
      $region49: #{tpu_custom_call.1} parent=5 // pred_check
        %p1309 = pneg %p1308
      $region50: #{tpu_custom_call.1} parent=5 // pred_check_branch
        %1311 = sbr.rel (%p1309) target = $region52
      $region51: #{tpu_custom_call.1} parent=5 // pred_region
        %s1312 = ssub.s32 %s15, 2
        // Predicated region
        $region53: #{tpu_custom_call.1} parent=51 // pred_check
          %p1313 = pneg %p136
        $region54: #{tpu_custom_call.1} parent=51 // pred_check_branch
          %1315 = sbr.rel (%p1313) target = $region56
        $region55: #{tpu_custom_call.1} parent=51 // pred_region
          %s1316 = sand.u32 %s121, 1
          %s1317 = scalar_lea.sflag [#allocation5], %s1316
          %s1318 = sand.u32 %s121, 1
          %s1319 = smul.addr %s1318, 128
          %s1320 = scalar_lea.vmem [#allocation6], %s1319
          %1321 = dma.done %s1317, 2048
        $region56: #{tpu_custom_call.1} parent=51 // pred_fallthru
          _
      $region52: #{tpu_custom_call.1} parent=5 // pred_fallthru
        _
    $region6: #{tpu_custom_call.1} parent=1 // loop_footer
      %s19 = sadd.s32 1, %s15
    $region7: #{tpu_custom_call.1} parent=1 // loop_footer_branch
      %14 = sbr.rel target = $region3
    $region8: #{tpu_custom_call.1} parent=1 // loop_exit
      _
    %1322 = vsyncpa [#allocation4], 1
    %s1323 = scalar_lea.sflag [#allocation4], 1
    %1324 = vsyncpa %s1323, 1
    %1325 = vsyncpa [#allocation5], 1
    %s1326 = scalar_lea.sflag [#allocation5], 1
    %1327 = vsyncpa %s1326, 1

</llo_original>
